<compile_context>
chip_gen: v7x
topology: tpu7x:2x2x1
jax: 0.10.0
libtpu: 0.0.40
codegen_flags: <defaults>
</compile_context>

<pallas_src>
import functools

import jax
import jax.numpy as jnp
from jax.experimental import pallas as pl
from jax.experimental.pallas import tpu as pltpu


def mlp_kernel(x_ref, w1_ref, b1_ref, w2_ref, b2_ref, o_ref):
    # TODO(synk): dropout (p=0.2) is identity in eval mode; training-mode RNG masking not reproduced.
    x = x_ref[...]  # bf16 activation tile
    # fc1: bf16 x bf16 on the MXU, f32 accumulation; bias add + ReLU stay in f32.
    h = jnp.dot(x, w1_ref[...], preferred_element_type=jnp.float32) + b1_ref[...]
    h = jnp.maximum(h, 0.0)
    # fc2: cast the hidden activations back to bf16 so the MXU gets native operands,
    # accumulate in f32, add bias in f32.
    y = jnp.dot(h.astype(w2_ref.dtype), w2_ref[...],
                preferred_element_type=jnp.float32) + b2_ref[...]
    o_ref[...] = y.astype(o_ref.dtype)


@functools.partial(jax.jit, static_argnames=("block_batch",))
def mlp_layer(x, w1, b1, w2, b2, *, block_batch=512):
    """x: [B, in_dim]; w1: [in_dim, mid_dim]; b1: [1, mid_dim]; w2: [mid_dim, out_dim]; b2: [1, out_dim]."""
    batch, in_dim = x.shape
    mid_dim = w1.shape[1]
    out_dim = w2.shape[1]

    # MXU-native operand dtypes (no-ops if parameters are already bf16); biases stay f32
    # so the bias add happens exactly on the f32 accumulator.
    xc = x.astype(jnp.bfloat16)
    w1c = w1.astype(jnp.bfloat16)
    w2c = w2.astype(jnp.bfloat16)
    b1c = b1.astype(jnp.float32)
    b2c = b2.astype(jnp.float32)

    # Resident-weight footprint (single-buffered bf16 weights + f32 biases).
    resident_bytes = (in_dim * mid_dim + mid_dim * out_dim) * 2 + (mid_dim + out_dim) * 4
    if resident_bytes > 48 * 1024 * 1024:
        # TODO(synk): tiled fallback (grid over (batch, out, mid) with the mid axis last /
        # "arbitrary" and an f32 VMEM accumulator) for hidden sizes whose weights don't fit VMEM.
        raise NotImplementedError("resident-weight MLP kernel requires weights < ~48 MiB")

    # Batch tiling: one fat step when the whole batch fits (single-TC v5e/v6e win);
    # otherwise 8-aligned tiles with a cdiv grid (independent blocks -> v7x megacore).
    if batch <= block_batch:
        tb = batch
        grid = (1,)
    else:
        tb = max(8, (block_batch // 8) * 8)
        grid = (pl.cdiv(batch, tb),)

    # Rough VMEM estimate: resident weights/biases + double-buffered x (bf16) and out (f32) tiles.
    vmem_est = resident_bytes + 2 * (tb * in_dim * 2 + tb * out_dim * 4) + (1 << 20)
    compiler_kwargs = dict(dimension_semantics=("parallel",))
    if vmem_est > 32 * 1024 * 1024:
        compiler_kwargs["vmem_limit_bytes"] = min(int(vmem_est * 3 // 2), 100 * 1024 * 1024)

    return pl.pallas_call(
        mlp_kernel,
        out_shape=jax.ShapeDtypeStruct((batch, out_dim), jnp.float32),
        grid_spec=pltpu.PrefetchScalarGridSpec(
            num_scalar_prefetch=0,
            grid=grid,
            in_specs=[
                # Activation tile: marches along the batch axis (double-buffered by Pallas).
                pl.BlockSpec((tb, in_dim), lambda i: (i, 0)),
                # Weights / biases: constant block index + single buffer -> one resident VMEM copy.
                pl.BlockSpec((in_dim, mid_dim), lambda i: (0, 0), pipeline_mode=pl.Buffered(1)),
                pl.BlockSpec((1, mid_dim), lambda i: (0, 0), pipeline_mode=pl.Buffered(1)),
                pl.BlockSpec((mid_dim, out_dim), lambda i: (0, 0), pipeline_mode=pl.Buffered(1)),
                pl.BlockSpec((1, out_dim), lambda i: (0, 0), pipeline_mode=pl.Buffered(1)),
            ],
            out_specs=pl.BlockSpec((tb, out_dim), lambda i: (i, 0)),
        ),
        compiler_params=pltpu.CompilerParams(**compiler_kwargs),
    )(xc, w1c, b1c, w2c, b2c)


if __name__ == "__main__":
    # Shapes consistent with MLPLayer(in_dim=32, out_dim=32): mid_dim = in_dim // 2 = 16.
    batch, in_dim, out_dim = 256, 32, 32
    mid_dim = in_dim // 2

    key = jax.random.PRNGKey(0)
    kx, kw1, kb1, kw2, kb2 = jax.random.split(key, 5)

    x = jax.random.normal(kx, (batch, in_dim), dtype=jnp.float32)

    # Deterministic parameter init (uniform, like PyTorch Linear default bound = 1/sqrt(fan_in)).
    bound1 = 1.0 / jnp.sqrt(in_dim)
    bound2 = 1.0 / jnp.sqrt(mid_dim)
    w1 = jax.random.uniform(kw1, (in_dim, mid_dim), jnp.float32, -bound1, bound1)
    b1 = jax.random.uniform(kb1, (1, mid_dim), jnp.float32, -bound1, bound1)
    w2 = jax.random.uniform(kw2, (mid_dim, out_dim), jnp.float32, -bound2, bound2)
    b2 = jax.random.uniform(kb2, (1, out_dim), jnp.float32, -bound2, bound2)

    # Cast parameters to bf16 once at "init" (hoisted out of the per-call path).
    w1b = w1.astype(jnp.bfloat16)
    w2b = w2.astype(jnp.bfloat16)

    # Single-block path: grid=(1,) (best for single-TC v5e/v6e at this size).
    out1 = mlp_layer(x, w1b, b1, w2b, b2)
    # Tiled path: grid=(2,), batch axis "parallel" (exercises pipelining / v7x megacore).
    out2 = mlp_layer(x, w1b, b1, w2b, b2, block_batch=128)
    jax.block_until_ready((out1, out2))

    # Reference with the same bf16 operand rounding as the kernel, f32 accumulation.
    hp = jax.lax.Precision.HIGHEST
    xr = x.astype(jnp.bfloat16).astype(jnp.float32)
    w1r = w1b.astype(jnp.float32)
    w2r = w2b.astype(jnp.float32)
    h_ref = jnp.maximum(jnp.dot(xr, w1r, precision=hp) + b1, 0.0)
    ref = jnp.dot(h_ref.astype(jnp.bfloat16).astype(jnp.float32), w2r, precision=hp) + b2

    assert out1.shape == (batch, out_dim) and out1.dtype == jnp.float32
    assert jnp.allclose(out1, ref, atol=1e-2, rtol=1e-2)
    assert jnp.allclose(out2, ref, atol=1e-2, rtol=1e-2)

    print("KERNEL_OK")
</pallas_src>

<mosaic_0001>
module attributes {stable_mosaic.version = 11 : i64} {
  func.func @mlp_kernel(%arg0: i32, %arg1: memref<256x32xbf16, #tpu.memory_space<vmem>>, %arg2: memref<32x16xbf16, #tpu.memory_space<vmem>>, %arg3: memref<1x16xf32, #tpu.memory_space<vmem>>, %arg4: memref<16x32xbf16, #tpu.memory_space<vmem>>, %arg5: memref<1x32xf32, #tpu.memory_space<vmem>>, %arg6: memref<256x32xf32, #tpu.memory_space<vmem>>) attributes {dimension_semantics = [#tpu.dimension_semantics<parallel>], iteration_bounds = array<i64: 1>, scalar_prefetch = 0 : i64, scratch_operands = 0 : i64, tpu.core_type = #tpu.core_type<tc>, window_params = [{transform_indices = @transform_0, window_bounds = array<i64: 256, 32>}, {pipeline_mode = #tpu.pipeline_mode<synchronous>, transform_indices = @transform_1, window_bounds = array<i64: 32, 16>}, {pipeline_mode = #tpu.pipeline_mode<synchronous>, transform_indices = @transform_2, window_bounds = array<i64: 1, 16>}, {pipeline_mode = #tpu.pipeline_mode<synchronous>, transform_indices = @transform_3, window_bounds = array<i64: 16, 32>}, {pipeline_mode = #tpu.pipeline_mode<synchronous>, transform_indices = @transform_4, window_bounds = array<i64: 1, 32>}, {transform_indices = @transform_5, window_bounds = array<i64: 256, 32>}]} {
    %c0 = arith.constant 0 : index
    %c0_0 = arith.constant 0 : index
    %0 = vector.load %arg1[%c0, %c0_0] : memref<256x32xbf16, #tpu.memory_space<vmem>>, vector<256x32xbf16>
    %c0_1 = arith.constant 0 : index
    %c0_2 = arith.constant 0 : index
    %1 = vector.load %arg2[%c0_1, %c0_2] : memref<32x16xbf16, #tpu.memory_space<vmem>>, vector<32x16xbf16>
    %cst = arith.constant dense<0.000000e+00> : vector<256x16xf32>
    %2 = tpu.matmul %0, %1, %cst {dimension_numbers = #tpu.dot_dimension_numbers<[1], [0], [0], [1], [0, 0, 1, 1], [], []>} : vector<256x32xbf16>, vector<32x16xbf16>, vector<256x16xf32> -> vector<256x16xf32>
    %c0_3 = arith.constant 0 : index
    %c0_4 = arith.constant 0 : index
    %3 = vector.load %arg3[%c0_3, %c0_4] : memref<1x16xf32, #tpu.memory_space<vmem>>, vector<1x16xf32>
    %4 = vector.broadcast %3 : vector<1x16xf32> to vector<256x16xf32>
    %5 = arith.addf %2, %4 : vector<256x16xf32>
    %cst_5 = arith.constant 0.000000e+00 : f32
    %6 = vector.broadcast %cst_5 : f32 to vector<256x16xf32>
    %7 = arith.maximumf %5, %6 : vector<256x16xf32>
    %8 = arith.truncf %7 : vector<256x16xf32> to vector<256x16xbf16>
    %c0_6 = arith.constant 0 : index
    %c0_7 = arith.constant 0 : index
    %9 = vector.load %arg4[%c0_6, %c0_7] : memref<16x32xbf16, #tpu.memory_space<vmem>>, vector<16x32xbf16>
    %cst_8 = arith.constant dense<0.000000e+00> : vector<256x32xf32>
    %10 = tpu.matmul %8, %9, %cst_8 {dimension_numbers = #tpu.dot_dimension_numbers<[1], [0], [0], [1], [0, 0, 1, 1], [], []>} : vector<256x16xbf16>, vector<16x32xbf16>, vector<256x32xf32> -> vector<256x32xf32>
    %c0_9 = arith.constant 0 : index
    %c0_10 = arith.constant 0 : index
    %11 = vector.load %arg5[%c0_9, %c0_10] : memref<1x32xf32, #tpu.memory_space<vmem>>, vector<1x32xf32>
    %12 = vector.broadcast %11 : vector<1x32xf32> to vector<256x32xf32>
    %13 = arith.addf %10, %12 : vector<256x32xf32>
    %c0_11 = arith.constant 0 : index
    %c0_12 = arith.constant 0 : index
    %14 = vector.load %arg6[%c0_11, %c0_12] : memref<256x32xf32, #tpu.memory_space<vmem>>, vector<256x32xf32>
    tpu.vector_store %arg6[%c0_11, %c0_12], %13 {strides = array<i32>} : memref<256x32xf32, #tpu.memory_space<vmem>>, vector<256x32xf32>,
    return
  }
  func.func @transform_0(%arg0: i32) -> (i32, i32) {
    %c0_i32 = arith.constant 0 : i32
    %c0_i32_0 = arith.constant 0 : i32
    return %arg0, %c0_i32 : i32, i32
  }
  func.func @transform_1(%arg0: i32) -> (i32, i32) {
    %c0_i32 = arith.constant 0 : i32
    %c0_i32_0 = arith.constant 0 : i32
    %c0_i32_1 = arith.constant 0 : i32
    return %c0_i32, %c0_i32_0 : i32, i32
  }
  func.func @transform_2(%arg0: i32) -> (i32, i32) {
    %c0_i32 = arith.constant 0 : i32
    %c0_i32_0 = arith.constant 0 : i32
    %c0_i32_1 = arith.constant 0 : i32
    return %c0_i32, %c0_i32_0 : i32, i32
  }
  func.func @transform_3(%arg0: i32) -> (i32, i32) {
    %c0_i32 = arith.constant 0 : i32
    %c0_i32_0 = arith.constant 0 : i32
    %c0_i32_1 = arith.constant 0 : i32
    return %c0_i32, %c0_i32_0 : i32, i32
  }
  func.func @transform_4(%arg0: i32) -> (i32, i32) {
    %c0_i32 = arith.constant 0 : i32
    %c0_i32_0 = arith.constant 0 : i32
    %c0_i32_1 = arith.constant 0 : i32
    return %c0_i32, %c0_i32_0 : i32, i32
  }
  func.func @transform_5(%arg0: i32) -> (i32, i32) {
    %c0_i32 = arith.constant 0 : i32
    %c0_i32_0 = arith.constant 0 : i32
    return %arg0, %c0_i32 : i32, i32
  }
}

</mosaic_0001>

<llo_original>
// kernel: mlp_layer.1
$region0: #{mlp_layer.1}
  #allocation0 [shape = 'u32[]', space=smem, size = 0x4, offset = 0x4, fixed_abs, tag = 'smem constant byte address 0x4 - core index']
  #allocation1 [shape = 'u32[144,128]{1,0:T(1,128)}', space=vmem, size = 0x12000, scoped, tag = 'internal scratch']
  %s0 = inlined_call_operand.vmem [shape: bf16[256,32], index: 0, kind: input, shape index: {}]
  %s1 = inlined_call_operand.vmem [shape: bf16[32,16], index: 1, kind: input, shape index: {}]
  %s2 = inlined_call_operand.vmem [shape: f32[1,16], index: 2, kind: input, shape index: {}]
  %s3 = inlined_call_operand.vmem [shape: bf16[16,32], index: 3, kind: input, shape index: {}]
  %s4 = inlined_call_operand.vmem [shape: f32[1,32], index: 4, kind: input, shape index: {}]
  %s5 = inlined_call_operand.vmem [shape: f32[256,32], index: 5, kind: output, shape index: {}]
  %s6 = sld [smem:[#allocation0]]
  $region30: #{mlp_layer.1} parent=0
    _
  %s8 = ssub.s32 1, %s6
  %s9 = scalar_select 0, %s8, %s6
  // Predicated region
  $region2: #{mlp_layer.1} parent=0 // pred_check
    _
  $region3: #{mlp_layer.1} parent=0 // pred_check_branch
    %11 = sbr.rel (0) target = $region5
  $region4: #{mlp_layer.1} parent=0 // pred_region
    _
  $region5: #{mlp_layer.1} parent=0 // pred_fallthru
    _
  // Predicated region
  $region6: #{mlp_layer.1} parent=0 // pred_check
    _
  $region7: #{mlp_layer.1} parent=0 // pred_check_branch
    %13 = sbr.rel (0) target = $region9
  $region8: #{mlp_layer.1} parent=0 // pred_region
    _
  $region9: #{mlp_layer.1} parent=0 // pred_fallthru
    _
  // Predicated region
  $region10: #{mlp_layer.1} parent=0 // pred_check
    _
  $region11: #{mlp_layer.1} parent=0 // pred_check_branch
    %15 = sbr.rel (0) target = $region13
  $region12: #{mlp_layer.1} parent=0 // pred_region
    _
  $region13: #{mlp_layer.1} parent=0 // pred_fallthru
    _
  // Predicated region
  $region14: #{mlp_layer.1} parent=0 // pred_check
    _
  $region15: #{mlp_layer.1} parent=0 // pred_check_branch
    %17 = sbr.rel (0) target = $region17
  $region16: #{mlp_layer.1} parent=0 // pred_region
    _
  $region17: #{mlp_layer.1} parent=0 // pred_fallthru
    _
  // Predicated region
  $region18: #{mlp_layer.1} parent=0 // pred_check
    _
  $region19: #{mlp_layer.1} parent=0 // pred_check_branch
    %19 = sbr.rel (0) target = $region21
  $region20: #{mlp_layer.1} parent=0 // pred_region
    _
  $region21: #{mlp_layer.1} parent=0 // pred_fallthru
    _
  %v21 = vld [vmem:[%s0] sm:$0xf]
  %v22 = vld [vmem:[%s0 + $0x4] sm:$0xf]
  %v23 = vld [vmem:[%s0 + $0x8] sm:$0xf]
  %v24 = vld [vmem:[%s0 + $0xc] sm:$0xf]
  %v25 = vld [vmem:[%s0 + $0x10] sm:$0xf]
  %v26 = vld [vmem:[%s0 + $0x14] sm:$0xf]
  %v27 = vld [vmem:[%s0 + $0x18] sm:$0xf]
  %v28 = vld [vmem:[%s0 + $0x1c] sm:$0xf]
  %v29 = vld [vmem:[%s0 + $0x20] sm:$0xf]
  %v30 = vld [vmem:[%s0 + $0x24] sm:$0xf]
  %v31 = vld [vmem:[%s0 + $0x28] sm:$0xf]
  %v32 = vld [vmem:[%s0 + $0x2c] sm:$0xf]
  %v33 = vld [vmem:[%s0 + $0x30] sm:$0xf]
  %v34 = vld [vmem:[%s0 + $0x34] sm:$0xf]
  %v35 = vld [vmem:[%s0 + $0x38] sm:$0xf]
  %v36 = vld [vmem:[%s0 + $0x3c] sm:$0xf]
  %v37 = vld [vmem:[%s0 + $0x40] sm:$0xf]
  %v38 = vld [vmem:[%s0 + $0x44] sm:$0xf]
  %v39 = vld [vmem:[%s0 + $0x48] sm:$0xf]
  %v40 = vld [vmem:[%s0 + $0x4c] sm:$0xf]
  %v41 = vld [vmem:[%s0 + $0x50] sm:$0xf]
  %v42 = vld [vmem:[%s0 + $0x54] sm:$0xf]
  %v43 = vld [vmem:[%s0 + $0x58] sm:$0xf]
  %v44 = vld [vmem:[%s0 + $0x5c] sm:$0xf]
  %v45 = vld [vmem:[%s0 + $0x60] sm:$0xf]
  %v46 = vld [vmem:[%s0 + $0x64] sm:$0xf]
  %v47 = vld [vmem:[%s0 + $0x68] sm:$0xf]
  %v48 = vld [vmem:[%s0 + $0x6c] sm:$0xf]
  %v49 = vld [vmem:[%s0 + $0x70] sm:$0xf]
  %v50 = vld [vmem:[%s0 + $0x74] sm:$0xf]
  %v51 = vld [vmem:[%s0 + $0x78] sm:$0xf]
  %v52 = vld [vmem:[%s0 + $0x7c] sm:$0xf]
  %v53 = vld [vmem:[%s1] sm:$0xf]
  %v54 = vld [vmem:[%s1 + $0x4] sm:$0xf]
  %v55 = vld [vmem:[%s1 + $0x8] sm:$0xf]
  %v56 = vld [vmem:[%s1 + $0xc] sm:$0xf]
  %v57 = vld [vmem:[%s2] sm:$0x1]
  %v59 = vlaneseq
  %v60 = vshrl.u32 %v59, 7
  %v61 = vsub.s32 0, %v60
  %v62 = vrot.slane %v57, %v61
  %v96 = vunpack.c.l.b16 %v21
  %v97 = vunpack.c.l.b16 %v22
  %v98 = vunpack.c.l.b16 %v23
  %v99 = vunpack.c.l.b16 %v24
  %v100 = vunpack.c.l.b16 %v25
  %v101 = vunpack.c.l.b16 %v26
  %v102 = vunpack.c.l.b16 %v27
  %v103 = vunpack.c.l.b16 %v28
  %v104 = vunpack.c.l.b16 %v29
  %v105 = vunpack.c.l.b16 %v30
  %v106 = vunpack.c.l.b16 %v31
  %v107 = vunpack.c.l.b16 %v32
  %v108 = vunpack.c.l.b16 %v33
  %v109 = vunpack.c.l.b16 %v34
  %v110 = vunpack.c.l.b16 %v35
  %v111 = vunpack.c.l.b16 %v36
  %v112 = vunpack.c.l.b16 %v37
  %v113 = vunpack.c.l.b16 %v38
  %v114 = vunpack.c.l.b16 %v39
  %v115 = vunpack.c.l.b16 %v40
  %v116 = vunpack.c.l.b16 %v41
  %v117 = vunpack.c.l.b16 %v42
  %v118 = vunpack.c.l.b16 %v43
  %v119 = vunpack.c.l.b16 %v44
  %v120 = vunpack.c.l.b16 %v45
  %v121 = vunpack.c.l.b16 %v46
  %v122 = vunpack.c.l.b16 %v47
  %v123 = vunpack.c.l.b16 %v48
  %v124 = vunpack.c.l.b16 %v49
  %v125 = vunpack.c.l.b16 %v50
  %v126 = vunpack.c.l.b16 %v51
  %v127 = vunpack.c.l.b16 %v52
  %v128 = vpack.c.b16 %v97, %v96
  %v129 = vpack.c.b16 %v99, %v98
  %v130 = vpack.c.b16 %v101, %v100
  %v131 = vpack.c.b16 %v103, %v102
  %v132 = vpack.c.b16 %v105, %v104
  %v133 = vpack.c.b16 %v107, %v106
  %v134 = vpack.c.b16 %v109, %v108
  %v135 = vpack.c.b16 %v111, %v110
  %v136 = vpack.c.b16 %v113, %v112
  %v137 = vpack.c.b16 %v115, %v114
  %v138 = vpack.c.b16 %v117, %v116
  %v139 = vpack.c.b16 %v119, %v118
  %v140 = vpack.c.b16 %v121, %v120
  %v141 = vpack.c.b16 %v123, %v122
  %v142 = vpack.c.b16 %v125, %v124
  %v143 = vpack.c.b16 %v127, %v126
  %v148 = vunpack.c.l.b16 %v53
  %v149 = vunpack.c.l.b16 %v54
  %v150 = vunpack.c.l.b16 %v55
  %v151 = vunpack.c.l.b16 %v56
  %v152 = vpack.c.b16 %v149, %v148
  %v153 = vpack.c.b16 %v151, %v150
  %vm156 = vcmask 261120
  %v158 = vsel %vm156, %v128, 0
  %v161 = vsel %vm156, %v129, 0
  %v164 = vsel %vm156, %v130, 0
  %v167 = vsel %vm156, %v131, 0
  %v170 = vsel %vm156, %v132, 0
  %v173 = vsel %vm156, %v133, 0
  %v176 = vsel %vm156, %v134, 0
  %v179 = vsel %vm156, %v135, 0
  %v182 = vsel %vm156, %v136, 0
  %v185 = vsel %vm156, %v137, 0
  %v188 = vsel %vm156, %v138, 0
  %v191 = vsel %vm156, %v139, 0
  %v194 = vsel %vm156, %v140, 0
  %v197 = vsel %vm156, %v141, 0
  %v200 = vsel %vm156, %v142, 0
  %v203 = vsel %vm156, %v143, 0
  %205 = vmatprep.subr.bf16.mxu0 0
  %206 = vmatpush1.bf16.msra.mxu0 %v152
  %207 = vmatprep.subr.bf16.mxu0 0
  %208 = vmatpush1.bf16.msra.mxu0 %v153
  %209 = vmatprep.subr.bf16.mxu0 0
  %210 = vmatpush1.bf16.msra.mxu0 0
  %211 = vmatprep.subr.bf16.mxu0 0
  %212 = vmatpush1.bf16.msra.mxu0 0
  %213 = vmatprep.subr.bf16.mxu0 0
  %214 = vmatpush1.bf16.msra.mxu0 0
  %215 = vmatprep.subr.bf16.mxu0 0
  %216 = vmatpush1.bf16.msra.mxu0 0
  %217 = vmatprep.subr.bf16.mxu0 0
  %218 = vmatpush1.bf16.msra.mxu0 0
  %219 = vmatprep.subr.bf16.mxu0 0
  %220 = vmatpush1.bf16.msra.mxu0 0
  %221 = vmatprep.subr.bf16.mxu0 0
  %222 = vmatpush1.bf16.msra.mxu0 0
  %223 = vmatprep.subr.bf16.mxu0 0
  %224 = vmatpush1.bf16.msra.mxu0 0
  %225 = vmatprep.subr.bf16.mxu0 0
  %226 = vmatpush1.bf16.msra.mxu0 0
  %227 = vmatprep.subr.bf16.mxu0 0
  %228 = vmatpush1.bf16.msra.mxu0 0
  %229 = vmatprep.subr.bf16.mxu0 0
  %230 = vmatpush1.bf16.msra.mxu0 0
  %231 = vmatprep.subr.bf16.mxu0 0
  %232 = vmatpush1.bf16.msra.mxu0 0
  %233 = vmatprep.subr.bf16.mxu0 0
  %234 = vmatpush1.bf16.msra.mxu0 0
  %235 = vmatprep.subr.bf16.mxu0 0
  %236 = vmatpush1.bf16.msra.mxu0 0
  %237 = vmatprep.mubr.bf16.mxu0 0
  %238 = vmatmul.mubr.bf16.gmra.mrb[0].mxu0 %v158
  %v239 = vpop.f32.mrb[0].mxu0
  %v240 = vadd.f32 %v62, %v239
  %v241 = vpop.f32.mrb[0].mxu0
  %v242 = vpop.f32.mrb[0].mxu0
  %v243 = vadd.f32 %v62, %v242
  %v244 = vpop.f32.mrb[0].mxu0
  %245 = vmatprep.mubr.bf16.mxu0 0
  %246 = vmatmul.mubr.bf16.gmra.mrb[0].mxu0 %v161
  %v247 = vpop.f32.mrb[0].mxu0
  %v248 = vadd.f32 %v62, %v247
  %v249 = vpop.f32.mrb[0].mxu0
  %v250 = vpop.f32.mrb[0].mxu0
  %v251 = vadd.f32 %v62, %v250
  %v252 = vpop.f32.mrb[0].mxu0
  %253 = vmatprep.mubr.bf16.mxu0 0
  %254 = vmatmul.mubr.bf16.gmra.mrb[0].mxu0 %v164
  %v255 = vpop.f32.mrb[0].mxu0
  %v256 = vadd.f32 %v62, %v255
  %v257 = vpop.f32.mrb[0].mxu0
  %v258 = vpop.f32.mrb[0].mxu0
  %v259 = vadd.f32 %v62, %v258
  %v260 = vpop.f32.mrb[0].mxu0
  %261 = vmatprep.mubr.bf16.mxu0 0
  %262 = vmatmul.mubr.bf16.gmra.mrb[0].mxu0 %v167
  %v263 = vpop.f32.mrb[0].mxu0
  %v264 = vadd.f32 %v62, %v263
  %v265 = vpop.f32.mrb[0].mxu0
  %v266 = vpop.f32.mrb[0].mxu0
  %v267 = vadd.f32 %v62, %v266
  %v268 = vpop.f32.mrb[0].mxu0
  %269 = vmatprep.mubr.bf16.mxu0 0
  %270 = vmatmul.mubr.bf16.gmra.mrb[0].mxu0 %v170
  %v271 = vpop.f32.mrb[0].mxu0
  %v272 = vadd.f32 %v62, %v271
  %v273 = vpop.f32.mrb[0].mxu0
  %v274 = vpop.f32.mrb[0].mxu0
  %v275 = vadd.f32 %v62, %v274
  %v276 = vpop.f32.mrb[0].mxu0
  %277 = vmatprep.mubr.bf16.mxu0 0
  %278 = vmatmul.mubr.bf16.gmra.mrb[0].mxu0 %v173
  %v279 = vpop.f32.mrb[0].mxu0
  %v280 = vadd.f32 %v62, %v279
  %v281 = vpop.f32.mrb[0].mxu0
  %v282 = vpop.f32.mrb[0].mxu0
  %v283 = vadd.f32 %v62, %v282
  %v284 = vpop.f32.mrb[0].mxu0
  %285 = vmatprep.mubr.bf16.mxu0 0
  %286 = vmatmul.mubr.bf16.gmra.mrb[0].mxu0 %v176
  %v287 = vpop.f32.mrb[0].mxu0
  %v288 = vadd.f32 %v62, %v287
  %v289 = vpop.f32.mrb[0].mxu0
  %v290 = vpop.f32.mrb[0].mxu0
  %v291 = vadd.f32 %v62, %v290
  %v292 = vpop.f32.mrb[0].mxu0
  %293 = vmatprep.mubr.bf16.mxu0 0
  %294 = vmatmul.mubr.bf16.gmra.mrb[0].mxu0 %v179
  %v295 = vpop.f32.mrb[0].mxu0
  %v296 = vadd.f32 %v62, %v295
  %v297 = vpop.f32.mrb[0].mxu0
  %v298 = vpop.f32.mrb[0].mxu0
  %v299 = vadd.f32 %v62, %v298
  %v300 = vpop.f32.mrb[0].mxu0
  %301 = vmatprep.mubr.bf16.mxu0 0
  %302 = vmatmul.mubr.bf16.gmra.mrb[0].mxu0 %v182
  %v303 = vpop.f32.mrb[0].mxu0
  %v304 = vadd.f32 %v62, %v303
  %v305 = vpop.f32.mrb[0].mxu0
  %v306 = vpop.f32.mrb[0].mxu0
  %v307 = vadd.f32 %v62, %v306
  %v308 = vpop.f32.mrb[0].mxu0
  %309 = vmatprep.mubr.bf16.mxu0 0
  %310 = vmatmul.mubr.bf16.gmra.mrb[0].mxu0 %v185
  %v311 = vpop.f32.mrb[0].mxu0
  %v312 = vadd.f32 %v62, %v311
  %v313 = vpop.f32.mrb[0].mxu0
  %v314 = vpop.f32.mrb[0].mxu0
  %v315 = vadd.f32 %v62, %v314
  %v316 = vpop.f32.mrb[0].mxu0
  %317 = vmatprep.mubr.bf16.mxu0 0
  %318 = vmatmul.mubr.bf16.gmra.mrb[0].mxu0 %v188
  %v319 = vpop.f32.mrb[0].mxu0
  %v320 = vadd.f32 %v62, %v319
  %v321 = vpop.f32.mrb[0].mxu0
  %v322 = vpop.f32.mrb[0].mxu0
  %v323 = vadd.f32 %v62, %v322
  %v324 = vpop.f32.mrb[0].mxu0
  %325 = vmatprep.mubr.bf16.mxu0 0
  %326 = vmatmul.mubr.bf16.gmra.mrb[0].mxu0 %v191
  %v327 = vpop.f32.mrb[0].mxu0
  %v328 = vadd.f32 %v62, %v327
  %v329 = vpop.f32.mrb[0].mxu0
  %v330 = vpop.f32.mrb[0].mxu0
  %v331 = vadd.f32 %v62, %v330
  %v332 = vpop.f32.mrb[0].mxu0
  %333 = vmatprep.mubr.bf16.mxu0 0
  %334 = vmatmul.mubr.bf16.gmra.mrb[0].mxu0 %v194
  %v335 = vpop.f32.mrb[0].mxu0
  %v336 = vadd.f32 %v62, %v335
  %v337 = vpop.f32.mrb[0].mxu0
  %v338 = vpop.f32.mrb[0].mxu0
  %v339 = vadd.f32 %v62, %v338
  %v340 = vpop.f32.mrb[0].mxu0
  %341 = vmatprep.mubr.bf16.mxu0 0
  %342 = vmatmul.mubr.bf16.gmra.mrb[0].mxu0 %v197
  %v343 = vpop.f32.mrb[0].mxu0
  %v344 = vadd.f32 %v62, %v343
  %v345 = vpop.f32.mrb[0].mxu0
  %v346 = vpop.f32.mrb[0].mxu0
  %v347 = vadd.f32 %v62, %v346
  %v348 = vpop.f32.mrb[0].mxu0
  %349 = vmatprep.mubr.bf16.mxu0 0
  %350 = vmatmul.mubr.bf16.gmra.mrb[0].mxu0 %v200
  %v351 = vpop.f32.mrb[0].mxu0
  %v352 = vadd.f32 %v62, %v351
  %v353 = vpop.f32.mrb[0].mxu0
  %v354 = vpop.f32.mrb[0].mxu0
  %v355 = vadd.f32 %v62, %v354
  %v356 = vpop.f32.mrb[0].mxu0
  %357 = vmatprep.mubr.bf16.mxu0 0
  %358 = vmatmul.mubr.bf16.gmra.mrb[0].mxu0 %v203
  %v359 = vpop.f32.mrb[0].mxu0
  %v360 = vadd.f32 %v62, %v359
  %v361 = vpop.f32.mrb[0].mxu0
  %v362 = vpop.f32.mrb[0].mxu0
  %v363 = vadd.f32 %v62, %v362
  %v364 = vpop.f32.mrb[0].mxu0
  %365 = vdwg.mxu0
  %v366 = vmax.f32 %v240, 0.0
  %v367 = vmax.f32 %v243, 0.0
  %v368 = vmax.f32 %v248, 0.0
  %v369 = vmax.f32 %v251, 0.0
  %v370 = vmax.f32 %v256, 0.0
  %v371 = vmax.f32 %v259, 0.0
  %v372 = vmax.f32 %v264, 0.0
  %v373 = vmax.f32 %v267, 0.0
  %v374 = vmax.f32 %v272, 0.0
  %v375 = vmax.f32 %v275, 0.0
  %v376 = vmax.f32 %v280, 0.0
  %v377 = vmax.f32 %v283, 0.0
  %v378 = vmax.f32 %v288, 0.0
  %v379 = vmax.f32 %v291, 0.0
  %v380 = vmax.f32 %v296, 0.0
  %v381 = vmax.f32 %v299, 0.0
  %v382 = vmax.f32 %v304, 0.0
  %v383 = vmax.f32 %v307, 0.0
  %v384 = vmax.f32 %v312, 0.0
  %v385 = vmax.f32 %v315, 0.0
  %v386 = vmax.f32 %v320, 0.0
  %v387 = vmax.f32 %v323, 0.0
  %v388 = vmax.f32 %v328, 0.0
  %v389 = vmax.f32 %v331, 0.0
  %v390 = vmax.f32 %v336, 0.0
  %v391 = vmax.f32 %v339, 0.0
  %v392 = vmax.f32 %v344, 0.0
  %v393 = vmax.f32 %v347, 0.0
  %v394 = vmax.f32 %v352, 0.0
  %v395 = vmax.f32 %v355, 0.0
  %v396 = vmax.f32 %v360, 0.0
  %v397 = vmax.f32 %v363, 0.0
  %v398 = vpack.c.bf16 %v367, %v366
  %v399 = vpack.c.bf16 %v369, %v368
  %v400 = vpack.c.bf16 %v371, %v370
  %v401 = vpack.c.bf16 %v373, %v372
  %v402 = vpack.c.bf16 %v375, %v374
  %v403 = vpack.c.bf16 %v377, %v376
  %v404 = vpack.c.bf16 %v379, %v378
  %v405 = vpack.c.bf16 %v381, %v380
  %v406 = vpack.c.bf16 %v383, %v382
  %v407 = vpack.c.bf16 %v385, %v384
  %v408 = vpack.c.bf16 %v387, %v386
  %v409 = vpack.c.bf16 %v389, %v388
  %v410 = vpack.c.bf16 %v391, %v390
  %v411 = vpack.c.bf16 %v393, %v392
  %v412 = vpack.c.bf16 %v395, %v394
  %v413 = vpack.c.bf16 %v397, %v396
  %v414 = vld [vmem:[%s3] sm:$0xf]
  %v415 = vld [vmem:[%s3 + $0x4] sm:$0xf]
  %v416 = vld [vmem:[%s4] sm:$0x1]
  %v418 = vlaneseq
  %v419 = vshrl.u32 %v418, 7
  %v420 = vsub.s32 0, %v419
  %v421 = vrot.slane %v416, %v420
  %v425 = vunpack.c.l.b16 %v414
  %v426 = vunpack.c.l.b16 %v415
  %v427 = vpack.c.b16 %v426, %v425
  %vm429 = vcmask 130048
  %v431 = vsel %vm429, %v398, 0
  %v434 = vsel %vm429, %v399, 0
  %v437 = vsel %vm429, %v400, 0
  %v440 = vsel %vm429, %v401, 0
  %v443 = vsel %vm429, %v402, 0
  %v446 = vsel %vm429, %v403, 0
  %v449 = vsel %vm429, %v404, 0
  %v452 = vsel %vm429, %v405, 0
  %v455 = vsel %vm429, %v406, 0
  %v458 = vsel %vm429, %v407, 0
  %v461 = vsel %vm429, %v408, 0
  %v464 = vsel %vm429, %v409, 0
  %v467 = vsel %vm429, %v410, 0
  %v470 = vsel %vm429, %v411, 0
  %v473 = vsel %vm429, %v412, 0
  %v476 = vsel %vm429, %v413, 0
  %478 = vmatprep.subr.bf16.mxu0 0
  %479 = vmatpush1.bf16.msra.mxu0 %v427
  %480 = vmatprep.subr.bf16.mxu0 0
  %481 = vmatpush1.bf16.msra.mxu0 0
  %482 = vmatprep.subr.bf16.mxu0 0
  %483 = vmatpush1.bf16.msra.mxu0 0
  %484 = vmatprep.subr.bf16.mxu0 0
  %485 = vmatpush1.bf16.msra.mxu0 0
  %486 = vmatprep.subr.bf16.mxu0 0
  %487 = vmatpush1.bf16.msra.mxu0 0
  %488 = vmatprep.subr.bf16.mxu0 0
  %489 = vmatpush1.bf16.msra.mxu0 0
  %490 = vmatprep.subr.bf16.mxu0 0
  %491 = vmatpush1.bf16.msra.mxu0 0
  %492 = vmatprep.subr.bf16.mxu0 0
  %493 = vmatpush1.bf16.msra.mxu0 0
  %494 = vmatprep.subr.bf16.mxu0 0
  %495 = vmatpush1.bf16.msra.mxu0 0
  %496 = vmatprep.subr.bf16.mxu0 0
  %497 = vmatpush1.bf16.msra.mxu0 0
  %498 = vmatprep.subr.bf16.mxu0 0
  %499 = vmatpush1.bf16.msra.mxu0 0
  %500 = vmatprep.subr.bf16.mxu0 0
  %501 = vmatpush1.bf16.msra.mxu0 0
  %502 = vmatprep.subr.bf16.mxu0 0
  %503 = vmatpush1.bf16.msra.mxu0 0
  %504 = vmatprep.subr.bf16.mxu0 0
  %505 = vmatpush1.bf16.msra.mxu0 0
  %506 = vmatprep.subr.bf16.mxu0 0
  %507 = vmatpush1.bf16.msra.mxu0 0
  %508 = vmatprep.subr.bf16.mxu0 0
  %509 = vmatpush1.bf16.msra.mxu0 0
  %510 = vmatprep.mubr.bf16.mxu0 0
  %511 = vmatmul.mubr.bf16.gmra.mrb[0].mxu0 %v431
  %v512 = vpop.f32.mrb[0].mxu0
  %v513 = vadd.f32 %v421, %v512
  %v514 = vpop.f32.mrb[0].mxu0
  %v515 = vpop.f32.mrb[0].mxu0
  %v516 = vadd.f32 %v421, %v515
  %v517 = vpop.f32.mrb[0].mxu0
  %518 = vmatprep.mubr.bf16.mxu0 0
  %519 = vmatmul.mubr.bf16.gmra.mrb[0].mxu0 %v434
  %v520 = vpop.f32.mrb[0].mxu0
  %v521 = vadd.f32 %v421, %v520
  %v522 = vpop.f32.mrb[0].mxu0
  %v523 = vpop.f32.mrb[0].mxu0
  %v524 = vadd.f32 %v421, %v523
  %v525 = vpop.f32.mrb[0].mxu0
  %526 = vmatprep.mubr.bf16.mxu0 0
  %527 = vmatmul.mubr.bf16.gmra.mrb[0].mxu0 %v437
  %v528 = vpop.f32.mrb[0].mxu0
  %v529 = vadd.f32 %v421, %v528
  %v530 = vpop.f32.mrb[0].mxu0
  %v531 = vpop.f32.mrb[0].mxu0
  %v532 = vadd.f32 %v421, %v531
  %v533 = vpop.f32.mrb[0].mxu0
  %534 = vmatprep.mubr.bf16.mxu0 0
  %535 = vmatmul.mubr.bf16.gmra.mrb[0].mxu0 %v440
  %v536 = vpop.f32.mrb[0].mxu0
  %v537 = vadd.f32 %v421, %v536
  %v538 = vpop.f32.mrb[0].mxu0
  %v539 = vpop.f32.mrb[0].mxu0
  %v540 = vadd.f32 %v421, %v539
  %v541 = vpop.f32.mrb[0].mxu0
  %542 = vmatprep.mubr.bf16.mxu0 0
  %543 = vmatmul.mubr.bf16.gmra.mrb[0].mxu0 %v443
  %v544 = vpop.f32.mrb[0].mxu0
  %v545 = vadd.f32 %v421, %v544
  %v546 = vpop.f32.mrb[0].mxu0
  %v547 = vpop.f32.mrb[0].mxu0
  %v548 = vadd.f32 %v421, %v547
  %v549 = vpop.f32.mrb[0].mxu0
  %550 = vmatprep.mubr.bf16.mxu0 0
  %551 = vmatmul.mubr.bf16.gmra.mrb[0].mxu0 %v446
  %v552 = vpop.f32.mrb[0].mxu0
  %v553 = vadd.f32 %v421, %v552
  %v554 = vpop.f32.mrb[0].mxu0
  %v555 = vpop.f32.mrb[0].mxu0
  %v556 = vadd.f32 %v421, %v555
  %v557 = vpop.f32.mrb[0].mxu0
  %558 = vmatprep.mubr.bf16.mxu0 0
  %559 = vmatmul.mubr.bf16.gmra.mrb[0].mxu0 %v449
  %v560 = vpop.f32.mrb[0].mxu0
  %v561 = vadd.f32 %v421, %v560
  %v562 = vpop.f32.mrb[0].mxu0
  %v563 = vpop.f32.mrb[0].mxu0
  %v564 = vadd.f32 %v421, %v563
  %v565 = vpop.f32.mrb[0].mxu0
  %566 = vmatprep.mubr.bf16.mxu0 0
  %567 = vmatmul.mubr.bf16.gmra.mrb[0].mxu0 %v452
  %v568 = vpop.f32.mrb[0].mxu0
  %v569 = vadd.f32 %v421, %v568
  %v570 = vpop.f32.mrb[0].mxu0
  %v571 = vpop.f32.mrb[0].mxu0
  %v572 = vadd.f32 %v421, %v571
  %v573 = vpop.f32.mrb[0].mxu0
  %574 = vmatprep.mubr.bf16.mxu0 0
  %575 = vmatmul.mubr.bf16.gmra.mrb[0].mxu0 %v455
  %v576 = vpop.f32.mrb[0].mxu0
  %v577 = vadd.f32 %v421, %v576
  %v578 = vpop.f32.mrb[0].mxu0
  %v579 = vpop.f32.mrb[0].mxu0
  %v580 = vadd.f32 %v421, %v579
  %v581 = vpop.f32.mrb[0].mxu0
  %582 = vmatprep.mubr.bf16.mxu0 0
  %583 = vmatmul.mubr.bf16.gmra.mrb[0].mxu0 %v458
  %v584 = vpop.f32.mrb[0].mxu0
  %v585 = vadd.f32 %v421, %v584
  %v586 = vpop.f32.mrb[0].mxu0
  %v587 = vpop.f32.mrb[0].mxu0
  %v588 = vadd.f32 %v421, %v587
  %v589 = vpop.f32.mrb[0].mxu0
  %590 = vmatprep.mubr.bf16.mxu0 0
  %591 = vmatmul.mubr.bf16.gmra.mrb[0].mxu0 %v461
  %v592 = vpop.f32.mrb[0].mxu0
  %v593 = vadd.f32 %v421, %v592
  %v594 = vpop.f32.mrb[0].mxu0
  %v595 = vpop.f32.mrb[0].mxu0
  %v596 = vadd.f32 %v421, %v595
  %v597 = vpop.f32.mrb[0].mxu0
  %598 = vmatprep.mubr.bf16.mxu0 0
  %599 = vmatmul.mubr.bf16.gmra.mrb[0].mxu0 %v464
  %v600 = vpop.f32.mrb[0].mxu0
  %v601 = vadd.f32 %v421, %v600
  %v602 = vpop.f32.mrb[0].mxu0
  %v603 = vpop.f32.mrb[0].mxu0
  %v604 = vadd.f32 %v421, %v603
  %v605 = vpop.f32.mrb[0].mxu0
  %606 = vmatprep.mubr.bf16.mxu0 0
  %607 = vmatmul.mubr.bf16.gmra.mrb[0].mxu0 %v467
  %v608 = vpop.f32.mrb[0].mxu0
  %v609 = vadd.f32 %v421, %v608
  %v610 = vpop.f32.mrb[0].mxu0
  %v611 = vpop.f32.mrb[0].mxu0
  %v612 = vadd.f32 %v421, %v611
  %v613 = vpop.f32.mrb[0].mxu0
  %614 = vmatprep.mubr.bf16.mxu0 0
  %615 = vmatmul.mubr.bf16.gmra.mrb[0].mxu0 %v470
  %v616 = vpop.f32.mrb[0].mxu0
  %v617 = vadd.f32 %v421, %v616
  %v618 = vpop.f32.mrb[0].mxu0
  %v619 = vpop.f32.mrb[0].mxu0
  %v620 = vadd.f32 %v421, %v619
  %v621 = vpop.f32.mrb[0].mxu0
  %622 = vmatprep.mubr.bf16.mxu0 0
  %623 = vmatmul.mubr.bf16.gmra.mrb[0].mxu0 %v473
  %v624 = vpop.f32.mrb[0].mxu0
  %v625 = vadd.f32 %v421, %v624
  %v626 = vpop.f32.mrb[0].mxu0
  %v627 = vpop.f32.mrb[0].mxu0
  %v628 = vadd.f32 %v421, %v627
  %v629 = vpop.f32.mrb[0].mxu0
  %630 = vmatprep.mubr.bf16.mxu0 0
  %631 = vmatmul.mubr.bf16.gmra.mrb[0].mxu0 %v476
  %v632 = vpop.f32.mrb[0].mxu0
  %v633 = vadd.f32 %v421, %v632
  %v634 = vpop.f32.mrb[0].mxu0
  %v635 = vpop.f32.mrb[0].mxu0
  %v636 = vadd.f32 %v421, %v635
  %v637 = vpop.f32.mrb[0].mxu0
  %638 = vdwg.mxu0
  %639 = vst.msk [vmem:[%s5] sm:$0xff] %vm156, %v513
  %640 = vst.msk [vmem:[%s5 + $0x8] sm:$0xff] %vm156, %v516
  %641 = vst.msk [vmem:[%s5 + $0x10] sm:$0xff] %vm156, %v521
  %642 = vst.msk [vmem:[%s5 + $0x18] sm:$0xff] %vm156, %v524
  %643 = vst.msk [vmem:[%s5 + $0x20] sm:$0xff] %vm156, %v529
  %644 = vst.msk [vmem:[%s5 + $0x28] sm:$0xff] %vm156, %v532
  %645 = vst.msk [vmem:[%s5 + $0x30] sm:$0xff] %vm156, %v537
  %646 = vst.msk [vmem:[%s5 + $0x38] sm:$0xff] %vm156, %v540
  %647 = vst.msk [vmem:[%s5 + $0x40] sm:$0xff] %vm156, %v545
  %648 = vst.msk [vmem:[%s5 + $0x48] sm:$0xff] %vm156, %v548
  %649 = vst.msk [vmem:[%s5 + $0x50] sm:$0xff] %vm156, %v553
  %650 = vst.msk [vmem:[%s5 + $0x58] sm:$0xff] %vm156, %v556
  %651 = vst.msk [vmem:[%s5 + $0x60] sm:$0xff] %vm156, %v561
  %652 = vst.msk [vmem:[%s5 + $0x68] sm:$0xff] %vm156, %v564
  %653 = vst.msk [vmem:[%s5 + $0x70] sm:$0xff] %vm156, %v569
  %654 = vst.msk [vmem:[%s5 + $0x78] sm:$0xff] %vm156, %v572
  %655 = vst.msk [vmem:[%s5 + $0x80] sm:$0xff] %vm156, %v577
  %656 = vst.msk [vmem:[%s5 + $0x88] sm:$0xff] %vm156, %v580
  %657 = vst.msk [vmem:[%s5 + $0x90] sm:$0xff] %vm156, %v585
  %658 = vst.msk [vmem:[%s5 + $0x98] sm:$0xff] %vm156, %v588
  %659 = vst.msk [vmem:[%s5 + $0xa0] sm:$0xff] %vm156, %v593
  %660 = vst.msk [vmem:[%s5 + $0xa8] sm:$0xff] %vm156, %v596
  %661 = vst.msk [vmem:[%s5 + $0xb0] sm:$0xff] %vm156, %v601
  %662 = vst.msk [vmem:[%s5 + $0xb8] sm:$0xff] %vm156, %v604
  %663 = vst.msk [vmem:[%s5 + $0xc0] sm:$0xff] %vm156, %v609
  %664 = vst.msk [vmem:[%s5 + $0xc8] sm:$0xff] %vm156, %v612
  %665 = vst.msk [vmem:[%s5 + $0xd0] sm:$0xff] %vm156, %v617
  %666 = vst.msk [vmem:[%s5 + $0xd8] sm:$0xff] %vm156, %v620
  %667 = vst.msk [vmem:[%s5 + $0xe0] sm:$0xff] %vm156, %v625
  %668 = vst.msk [vmem:[%s5 + $0xe8] sm:$0xff] %vm156, %v628
  %669 = vst.msk [vmem:[%s5 + $0xf0] sm:$0xff] %vm156, %v633
  %670 = vst.msk [vmem:[%s5 + $0xf8] sm:$0xff] %vm156, %v636
  // Predicated region
  $region22: #{mlp_layer.1} parent=0 // pred_check
    _
  $region23: #{mlp_layer.1} parent=0 // pred_check_branch
    %672 = sbr.rel (0) target = $region25
  $region24: #{mlp_layer.1} parent=0 // pred_region
    _
  $region25: #{mlp_layer.1} parent=0 // pred_fallthru
    _
  // Predicated region
  $region26: #{mlp_layer.1} parent=0 // pred_check
    _
  $region27: #{mlp_layer.1} parent=0 // pred_check_branch
    %674 = sbr.rel (0) target = $region29
  $region28: #{mlp_layer.1} parent=0 // pred_region
    _
  $region29: #{mlp_layer.1} parent=0 // pred_fallthru
    _

</llo_original>
